<compile_context>
chip_gen: v5e
topology: v5e:2x2
jax: 0.10.0
libtpu: 0.0.40
codegen_flags: <defaults>
</compile_context>

<pallas_src>
import jax
import jax.numpy as jnp
from jax import lax
from jax.experimental import pallas as pl
from jax.experimental.pallas import tpu as pltpu

_EPS = 1e-5
_NEG_SLOPE = 0.01  # PyTorch nn.LeakyReLU default


def block_kernel(x_ref, w_ref, b_ref, gamma_ref, beta_ref, o_ref, acc_ref):
    k = pl.program_id(1)

    @pl.when(k == 0)
    def _():
        acc_ref[...] = jnp.zeros_like(acc_ref)

    # Native (B, tk) x (tk, tn) matmul on the MXU, f32 accumulation.
    acc_ref[...] += jnp.dot(x_ref[...], w_ref[...],
                            preferred_element_type=jnp.float32)

    @pl.when(k == pl.num_programs(1) - 1)
    def _():
        z = acc_ref[...] + b_ref[...].astype(jnp.float32)

        # LeakyReLU (negative_slope = 0.01)
        a = jnp.where(z > 0, z, _NEG_SLOPE * z)

        # BatchNorm1d training-mode forward, one-pass stats over the full batch
        # (B is never tiled, so they are exact). Biased variance, eps = 1e-5.
        mean = jnp.mean(a, axis=0, keepdims=True)
        mean_sq = jnp.mean(a * a, axis=0, keepdims=True)
        var = jnp.maximum(mean_sq - mean * mean, 0.0)
        inv_std = lax.rsqrt(var + _EPS)                        # EUP, ~free
        scale = gamma_ref[...].astype(jnp.float32) * inv_std   # folded gamma*inv_std
        shift = beta_ref[...].astype(jnp.float32) - mean * scale
        o_ref[...] = (a * scale + shift).astype(o_ref.dtype)


def _round_up(n, m):
    return ((n + m - 1) // m) * m


def _divisors_128(n):
    return [d for d in range(128, n + 1, 128) if n % d == 0]


def _vmem_capacity_bytes():
    try:
        return int(pltpu.get_tpu_info().vmem_capacity_bytes)
    except Exception:
        return 64 * 1024 * 1024  # conservative fallback (v7x per-core VMEM)


def _pick_tiles(batch, k_pad, out_pad, cap_bytes):
    budget = cap_bytes // 2  # keep at least half of physical VMEM as headroom

    # K tile: largest 128-multiple divisor of k_pad, capped at 1024.
    k_divs = _divisors_128(k_pad)
    tk = max([d for d in k_divs if d <= 1024] or [k_divs[0]])

    def footprint(tn):
        elems = (2 * batch * tk      # x block, double-buffered
                 + 2 * tk * tn       # w block, double-buffered
                 + 2 * batch * tn    # output block, double-buffered
                 + batch * tn        # f32 accumulator scratch
                 + 6 * tn)           # bias/gamma/beta blocks
        return 4 * elems

    n_divs = _divisors_128(out_pad)
    fitting = [d for d in n_divs if footprint(d) <= budget] or [128]

    def pref(d):
        # Prefer >=2 output tiles (megacore) once tiles stay >=256 wide,
        # then 256-aligned tiles (v6e/v7x MXU width), then the largest tile.
        multi = 1 if (out_pad < 512 or (d <= out_pad // 2 and d >= 256)) else 0
        aligned = 1 if d % 256 == 0 else 0
        return (multi, aligned, d)

    tn = max(fitting, key=pref)
    return tk, tn, footprint(tn)


def block_forward(x, w, b, gamma, beta):
    """Block forward. x: (B, input_size); w: (output_size, input_size) = nn.Linear.weight."""
    batch, in_dim = x.shape
    out_dim = w.shape[0]

    k_pad = _round_up(in_dim, 128)
    out_pad = _round_up(out_dim, 128)

    # Zero-pad the contraction axis (zero cols/rows contribute nothing to the dot)
    # and the feature axis (padded features stay exactly zero through BN because
    # gamma/beta are zero-padded); padding is sliced off at the end.
    if k_pad != in_dim:
        x = jnp.pad(x, ((0, 0), (0, k_pad - in_dim)))
        w = jnp.pad(w, ((0, 0), (0, k_pad - in_dim)))
    if out_pad != out_dim:
        w = jnp.pad(w, ((0, out_pad - out_dim), (0, 0)))
        b = jnp.pad(b, (0, out_pad - out_dim))
        gamma = jnp.pad(gamma, (0, out_pad - out_dim))
        beta = jnp.pad(beta, (0, out_pad - out_dim))

    # One-time HBM-side transpose: kernel sees native (K, N) weight tiles.
    w_t = w.T  # (k_pad, out_pad)

    b2 = b.reshape(1, out_pad)
    g2 = gamma.reshape(1, out_pad)
    be2 = beta.reshape(1, out_pad)

    cap = _vmem_capacity_bytes()
    tk, tn, fp = _pick_tiles(batch, k_pad, out_pad, cap)
    grid = (out_pad // tn, k_pad // tk)
    vmem_limit = int(min(cap * 3 // 4, max(4 * fp, 16 * 1024 * 1024)))

    y_pad = pl.pallas_call(
        block_kernel,
        out_shape=jax.ShapeDtypeStruct((batch, out_pad), x.dtype),
        grid_spec=pltpu.PrefetchScalarGridSpec(
            num_scalar_prefetch=0,
            grid=grid,
            in_specs=[
                pl.BlockSpec((batch, tk), lambda i, k: (0, k)),   # x: whole batch, K tile
                pl.BlockSpec((tk, tn), lambda i, k: (k, i)),      # w^T: (K tile, N tile)
                pl.BlockSpec((1, tn), lambda i, k: (0, i)),       # bias
                pl.BlockSpec((1, tn), lambda i, k: (0, i)),       # gamma
                pl.BlockSpec((1, tn), lambda i, k: (0, i)),       # beta
            ],
            out_specs=pl.BlockSpec((batch, tn), lambda i, k: (0, i)),
            scratch_shapes=[pltpu.VMEM((batch, tn), jnp.float32)],
        ),
        compiler_params=pltpu.CompilerParams(
            dimension_semantics=("parallel", "arbitrary"),
            vmem_limit_bytes=vmem_limit,
        ),
    )(x, w_t, b2, g2, be2)

    return y_pad[:, :out_dim] if out_pad != out_dim else y_pad


def _ref_forward(x, w, b, gamma, beta):
    z = x @ w.T + b
    a = jnp.where(z > 0, z, _NEG_SLOPE * z)
    m = a.mean(0, keepdims=True)
    v = ((a - m) ** 2).mean(0, keepdims=True)
    return gamma * (a - m) / jnp.sqrt(v + _EPS) + beta


def _make_case(key, batch, in_dim, out_dim):
    kx, kw, kb, kg, kbe = jax.random.split(key, 5)
    x = jax.random.normal(kx, (batch, in_dim), dtype=jnp.float32)
    w = jax.random.normal(kw, (out_dim, in_dim), dtype=jnp.float32) * 0.1
    b = jax.random.normal(kb, (out_dim,), dtype=jnp.float32) * 0.1
    gamma = 1.0 + 0.1 * jax.random.normal(kg, (out_dim,), dtype=jnp.float32)
    beta = 0.1 * jax.random.normal(kbe, (out_dim,), dtype=jnp.float32)
    return x, w, b, gamma, beta


if __name__ == "__main__":
    key = jax.random.PRNGKey(0)
    k1, k2, k3 = jax.random.split(key, 3)

    # Case 1: small shapes consistent with the module: Block(input_size=32, output_size=64)
    x, w, b, g, be = _make_case(k1, batch=8, in_dim=32, out_dim=64)
    y = block_forward(x, w, b, g, be)
    jax.block_until_ready(y)
    assert y.shape == (8, 64)
    assert jnp.allclose(y, _ref_forward(x, w, b, g, be), atol=1e-4, rtol=1e-4)

    # Case 2: non-trivial feature padding (out_pad = 384), single K tile.
    x, w, b, g, be = _make_case(k2, batch=16, in_dim=64, out_dim=384)
    y = block_forward(x, w, b, g, be)
    jax.block_until_ready(y)
    assert y.shape == (16, 384)
    assert jnp.allclose(y, _ref_forward(x, w, b, g, be), atol=1e-4, rtol=1e-4)

    # Case 3: exercises K tiling (2 K steps) and a multi-tile "parallel" N grid.
    x, w, b, g, be = _make_case(k3, batch=16, in_dim=2048, out_dim=1024)
    y = block_forward(x, w, b, g, be)
    jax.block_until_ready(y)
    assert y.shape == (16, 1024)
    assert jnp.allclose(y, _ref_forward(x, w, b, g, be), atol=1e-3, rtol=1e-3)

    # TODO(synk): Dropout regularizer branch (use_batch_norm=False) and BatchNorm
    # running_mean/running_var state updates are not implemented (forward output only).
    print("KERNEL_OK")
</pallas_src>

<mosaic_0001>
module attributes {stable_mosaic.version = 11 : i64} {
  func.func @block_kernel(%arg0: i32, %arg1: i32, %arg2: memref<8x128xf32, #tpu.memory_space<vmem>>, %arg3: memref<128x128xf32, #tpu.memory_space<vmem>>, %arg4: memref<1x128xf32, #tpu.memory_space<vmem>>, %arg5: memref<1x128xf32, #tpu.memory_space<vmem>>, %arg6: memref<1x128xf32, #tpu.memory_space<vmem>>, %arg7: memref<8x128xf32, #tpu.memory_space<vmem>>, %arg8: memref<8x128xf32, #tpu.memory_space<vmem>>) attributes {dimension_semantics = [#tpu.dimension_semantics<parallel>, #tpu.dimension_semantics<arbitrary>], iteration_bounds = array<i64: 1, 1>, scalar_prefetch = 0 : i64, scratch_operands = 1 : i64, tpu.core_type = #tpu.core_type<tc>, window_params = [{transform_indices = @transform_0, window_bounds = array<i64: 8, 128>}, {transform_indices = @transform_1, window_bounds = array<i64: 128, 128>}, {transform_indices = @transform_2, window_bounds = array<i64: 1, 128>}, {transform_indices = @transform_3, window_bounds = array<i64: 1, 128>}, {transform_indices = @transform_4, window_bounds = array<i64: 1, 128>}, {transform_indices = @transform_5, window_bounds = array<i64: 8, 128>}]} {
    %c0_i32 = arith.constant 0 : i32
    %0 = arith.cmpi eq, %arg1, %c0_i32 : i32
    %1 = arith.extui %0 : i1 to i32
    %c0_i32_0 = arith.constant 0 : i32
    %2 = arith.cmpi ne, %1, %c0_i32_0 : i32
    scf.if %2 {
      %cst_10 = arith.constant 0.000000e+00 : f32
      %12 = vector.broadcast %cst_10 : f32 to vector<8x128xf32>
      %c0_11 = arith.constant 0 : index
      %c0_12 = arith.constant 0 : index
      %13 = vector.load %arg8[%c0_11, %c0_12] : memref<8x128xf32, #tpu.memory_space<vmem>>, vector<8x128xf32>
      tpu.vector_store %arg8[%c0_11, %c0_12], %12 {strides = array<i32>} : memref<8x128xf32, #tpu.memory_space<vmem>>, vector<8x128xf32>,
    } else {
    }
    %c0 = arith.constant 0 : index
    %c0_1 = arith.constant 0 : index
    %3 = vector.load %arg8[%c0, %c0_1] : memref<8x128xf32, #tpu.memory_space<vmem>>, vector<8x128xf32>
    %c0_2 = arith.constant 0 : index
    %c0_3 = arith.constant 0 : index
    %4 = vector.load %arg2[%c0_2, %c0_3] : memref<8x128xf32, #tpu.memory_space<vmem>>, vector<8x128xf32>
    %c0_4 = arith.constant 0 : index
    %c0_5 = arith.constant 0 : index
    %5 = vector.load %arg3[%c0_4, %c0_5] : memref<128x128xf32, #tpu.memory_space<vmem>>, vector<128x128xf32>
    %cst = arith.constant dense<0.000000e+00> : vector<8x128xf32>
    %6 = tpu.matmul %4, %5, %cst {dimension_numbers = #tpu.dot_dimension_numbers<[1], [0], [0], [1], [0, 0, 1, 1], [], []>} : vector<8x128xf32>, vector<128x128xf32>, vector<8x128xf32> -> vector<8x128xf32>
    %7 = arith.addf %3, %6 : vector<8x128xf32>
    %c0_6 = arith.constant 0 : index
    %c0_7 = arith.constant 0 : index
    %8 = vector.load %arg8[%c0_6, %c0_7] : memref<8x128xf32, #tpu.memory_space<vmem>>, vector<8x128xf32>
    tpu.vector_store %arg8[%c0_6, %c0_7], %7 {strides = array<i32>} : memref<8x128xf32, #tpu.memory_space<vmem>>, vector<8x128xf32>,
    %c0_i32_8 = arith.constant 0 : i32
    %9 = arith.cmpi eq, %arg1, %c0_i32_8 : i32
    %10 = arith.extui %9 : i1 to i32
    %c0_i32_9 = arith.constant 0 : i32
    %11 = arith.cmpi ne, %10, %c0_i32_9 : i32
    scf.if %11 {
      %c0_10 = arith.constant 0 : index
      %c0_11 = arith.constant 0 : index
      %12 = vector.load %arg8[%c0_10, %c0_11] : memref<8x128xf32, #tpu.memory_space<vmem>>, vector<8x128xf32>
      %c0_12 = arith.constant 0 : index
      %c0_13 = arith.constant 0 : index
      %13 = vector.load %arg4[%c0_12, %c0_13] : memref<1x128xf32, #tpu.memory_space<vmem>>, vector<1x128xf32>
      %14 = vector.broadcast %13 : vector<1x128xf32> to vector<8x128xf32>
      %15 = arith.addf %12, %14 : vector<8x128xf32>
      %cst_14 = arith.constant 0.000000e+00 : f32
      %16 = vector.broadcast %cst_14 : f32 to vector<8x128xf32>
      %17 = arith.cmpf ogt, %15, %16 : vector<8x128xf32>
      %cst_15 = arith.constant 0.00999999977 : f32
      %18 = vector.broadcast %cst_15 : f32 to vector<8x128xf32>
      %19 = arith.mulf %18, %15 : vector<8x128xf32>
      %20 = arith.select %17, %15, %19 : vector<8x128xi1>, vector<8x128xf32>
      %cst_16 = arith.constant dense<0.000000e+00> : vector<128xf32>
      %21 = vector.multi_reduction <add>, %20, %cst_16 [0] : vector<8x128xf32> to vector<128xf32>
      %22 = vector.shape_cast %21 : vector<128xf32> to vector<1x128xf32>
      %cst_17 = arith.constant 8.000000e+00 : f32
      %23 = vector.broadcast %cst_17 : f32 to vector<1x128xf32>
      %24 = arith.divf %22, %23 : vector<1x128xf32>
      %25 = arith.mulf %20, %20 : vector<8x128xf32>
      %cst_18 = arith.constant dense<0.000000e+00> : vector<128xf32>
      %26 = vector.multi_reduction <add>, %25, %cst_18 [0] : vector<8x128xf32> to vector<128xf32>
      %27 = vector.shape_cast %26 : vector<128xf32> to vector<1x128xf32>
      %cst_19 = arith.constant 8.000000e+00 : f32
      %28 = vector.broadcast %cst_19 : f32 to vector<1x128xf32>
      %29 = arith.divf %27, %28 : vector<1x128xf32>
      %30 = arith.mulf %24, %24 : vector<1x128xf32>
      %31 = arith.subf %29, %30 : vector<1x128xf32>
      %cst_20 = arith.constant 0.000000e+00 : f32
      %32 = vector.broadcast %cst_20 : f32 to vector<1x128xf32>
      %33 = arith.maximumf %31, %32 : vector<1x128xf32>
      %cst_21 = arith.constant 9.99999974E-6 : f32
      %34 = vector.broadcast %cst_21 : f32 to vector<1x128xf32>
      %35 = arith.addf %33, %34 : vector<1x128xf32>
      %36 = math.rsqrt %35 : vector<1x128xf32>
      %c0_22 = arith.constant 0 : index
      %c0_23 = arith.constant 0 : index
      %37 = vector.load %arg5[%c0_22, %c0_23] : memref<1x128xf32, #tpu.memory_space<vmem>>, vector<1x128xf32>
      %38 = arith.mulf %37, %36 : vector<1x128xf32>
      %c0_24 = arith.constant 0 : index
      %c0_25 = arith.constant 0 : index
      %39 = vector.load %arg6[%c0_24, %c0_25] : memref<1x128xf32, #tpu.memory_space<vmem>>, vector<1x128xf32>
      %40 = arith.mulf %24, %38 : vector<1x128xf32>
      %41 = arith.subf %39, %40 : vector<1x128xf32>
      %42 = vector.broadcast %38 : vector<1x128xf32> to vector<8x128xf32>
      %43 = arith.mulf %20, %42 : vector<8x128xf32>
      %44 = vector.broadcast %41 : vector<1x128xf32> to vector<8x128xf32>
      %45 = arith.addf %43, %44 : vector<8x128xf32>
      %c0_26 = arith.constant 0 : index
      %c0_27 = arith.constant 0 : index
      %46 = vector.load %arg7[%c0_26, %c0_27] : memref<8x128xf32, #tpu.memory_space<vmem>>, vector<8x128xf32>
      tpu.vector_store %arg7[%c0_26, %c0_27], %45 {strides = array<i32>} : memref<8x128xf32, #tpu.memory_space<vmem>>, vector<8x128xf32>,
    } else {
    }
    return
  }
  func.func @transform_0(%arg0: i32, %arg1: i32) -> (i32, i32) {
    %c0_i32 = arith.constant 0 : i32
    %c0_i32_0 = arith.constant 0 : i32
    return %c0_i32, %arg1 : i32, i32
  }
  func.func @transform_1(%arg0: i32, %arg1: i32) -> (i32, i32) {
    %c0_i32 = arith.constant 0 : i32
    return %arg1, %arg0 : i32, i32
  }
  func.func @transform_2(%arg0: i32, %arg1: i32) -> (i32, i32) {
    %c0_i32 = arith.constant 0 : i32
    %c0_i32_0 = arith.constant 0 : i32
    return %c0_i32, %arg0 : i32, i32
  }
  func.func @transform_3(%arg0: i32, %arg1: i32) -> (i32, i32) {
    %c0_i32 = arith.constant 0 : i32
    %c0_i32_0 = arith.constant 0 : i32
    return %c0_i32, %arg0 : i32, i32
  }
  func.func @transform_4(%arg0: i32, %arg1: i32) -> (i32, i32) {
    %c0_i32 = arith.constant 0 : i32
    %c0_i32_0 = arith.constant 0 : i32
    return %c0_i32, %arg0 : i32, i32
  }
  func.func @transform_5(%arg0: i32, %arg1: i32) -> (i32, i32) {
    %c0_i32 = arith.constant 0 : i32
    %c0_i32_0 = arith.constant 0 : i32
    return %c0_i32, %arg0 : i32, i32
  }
}

</mosaic_0001>

<llo_original>
// kernel: tpu_custom_call.1
$region0: #{tpu_custom_call.1}
  #allocation0 [shape = 'u32[]', space=smem, size = 0x4, offset = 0x4, fixed_abs, tag = 'smem constant byte address 0x4 - core index']
  #allocation1 [shape = 'u32[72,128]{1,0:T(1,128)}', space=vmem, size = 0x9000, scoped, tag = 'internal scratch']
  #allocation2 [shape = 'f32[8,128]{1,0:T(8,128)}', space=vmem, size = 0x1000, scoped, tag = 'scratch operand']
  %s0 = inlined_call_operand.hbm [shape: f32[8,128], index: 0, kind: input, shape index: {}]
  %s1 = inlined_call_operand.hbm [shape: f32[128,128], index: 1, kind: input, shape index: {}]
  %s2 = inlined_call_operand.vmem [shape: f32[1,128], index: 2, kind: input, shape index: {}]
  %s3 = inlined_call_operand.vmem [shape: f32[1,128], index: 3, kind: input, shape index: {}]
  %s4 = inlined_call_operand.vmem [shape: f32[1,128], index: 4, kind: input, shape index: {}]
  %s5 = inlined_call_operand.hbm [shape: f32[8,128], index: 5, kind: output, shape index: {}]
  %s6 = sld [smem:[#allocation0]]
  $region46: #{tpu_custom_call.1} parent=0
    _
  %s8 = ssub.s32 1, %s6
  %s9 = scalar_select 0, %s8, %s6
  $region1: #{tpu_custom_call.1} parent=0
    #allocation3 [shape = 'u8[4096]{0}', space=vmem, size = 0x1000, scoped, tag = 'input window, operand 0, single buffered']
    #allocation4 [shape = 's32[1]{0}', space=sflag, size = 0x4, scoped, tag = 'scoped memory for tpu_custom_call.1']
    #allocation5 [shape = 's32[1]{0}', space=sflag, size = 0x4, scoped, tag = 'scoped memory for tpu_custom_call.1']
    #allocation6 [shape = 'u8[65536]{0}', space=vmem, size = 0x10000, scoped, tag = 'input window, operand 1, single buffered']
    #allocation7 [shape = 's32[1]{0}', space=sflag, size = 0x4, scoped, tag = 'scoped memory for tpu_custom_call.1']
    #allocation8 [shape = 'u8[4096]{0}', space=vmem, size = 0x1000, scoped, tag = 'output window, operand 0, single buffered']
    %10 = vsyncpa [#allocation4], 0
    %11 = vsyncpa [#allocation7], 0
    %12 = vsyncpa [#allocation5], 0
    // Predicated region
    $region2: #{tpu_custom_call.1} parent=1 // pred_check
      _
    $region3: #{tpu_custom_call.1} parent=1 // pred_check_branch
      %14 = sbr.rel (0) target = $region5
    $region4: #{tpu_custom_call.1} parent=1 // pred_region
      %16 = vsyncadd [#allocation4], 0
      %s18 = sshll.u32 %s0, 4
      %s19 = int_to_ptr.hbm [resolvable:$true] %s18
      %s20 = sshll.u32 [#allocation3], 4
      %s21 = int_to_ptr.vmem [resolvable:$true] %s20
      %23 = dma.hbm_to_vmem [thread:$0]  %s19, 128, %s21, [#allocation4]
    $region5: #{tpu_custom_call.1} parent=1 // pred_fallthru
      _
    // Predicated region
    $region6: #{tpu_custom_call.1} parent=1 // pred_check
      _
    $region7: #{tpu_custom_call.1} parent=1 // pred_check_branch
      %25 = sbr.rel (0) target = $region9
    $region8: #{tpu_custom_call.1} parent=1 // pred_region
      %27 = vsyncadd [#allocation7], 0
      %s28 = sshll.u32 %s1, 4
      %s29 = int_to_ptr.hbm [resolvable:$true] %s28
      %s30 = sshll.u32 [#allocation6], 4
      %s31 = int_to_ptr.vmem [resolvable:$true] %s30
      %36 = dma.hbm_to_vmem [thread:$0]  %s29, 2048, %s31, [#allocation7], 128, 128, 8
    $region9: #{tpu_custom_call.1} parent=1 // pred_fallthru
      _
    // Predicated region
    $region10: #{tpu_custom_call.1} parent=1 // pred_check
      _
    $region11: #{tpu_custom_call.1} parent=1 // pred_check_branch
      %38 = sbr.rel (0) target = $region13
    $region12: #{tpu_custom_call.1} parent=1 // pred_region
      _
    $region13: #{tpu_custom_call.1} parent=1 // pred_fallthru
      _
    // Predicated region
    $region14: #{tpu_custom_call.1} parent=1 // pred_check
      _
    $region15: #{tpu_custom_call.1} parent=1 // pred_check_branch
      %40 = sbr.rel (0) target = $region17
    $region16: #{tpu_custom_call.1} parent=1 // pred_region
      _
    $region17: #{tpu_custom_call.1} parent=1 // pred_fallthru
      _
    // Predicated region
    $region18: #{tpu_custom_call.1} parent=1 // pred_check
      _
    $region19: #{tpu_custom_call.1} parent=1 // pred_check_branch
      %42 = sbr.rel (0) target = $region21
    $region20: #{tpu_custom_call.1} parent=1 // pred_region
      _
    $region21: #{tpu_custom_call.1} parent=1 // pred_fallthru
      _
    // Predicated region
    $region22: #{tpu_custom_call.1} parent=1 // pred_check
      _
    $region23: #{tpu_custom_call.1} parent=1 // pred_check_branch
      %44 = sbr.rel (0) target = $region25
    $region24: #{tpu_custom_call.1} parent=1 // pred_region
      %46 = dma.done [#allocation4], 128
    $region25: #{tpu_custom_call.1} parent=1 // pred_fallthru
      _
    // Predicated region
    $region26: #{tpu_custom_call.1} parent=1 // pred_check
      _
    $region27: #{tpu_custom_call.1} parent=1 // pred_check_branch
      %48 = sbr.rel (0) target = $region29
    $region28: #{tpu_custom_call.1} parent=1 // pred_region
      %50 = dma.done [#allocation7], 2048
    $region29: #{tpu_custom_call.1} parent=1 // pred_fallthru
      _
    %p51 = scmp.eq.s32.totalorder 0, 0
    // Predicated region
    $region30: #{tpu_custom_call.1} parent=1 // pred_check
      %p52 = pneg %p51
    $region31: #{tpu_custom_call.1} parent=1 // pred_check_branch
      %54 = sbr.rel (%p52) target = $region33
    $region32: #{tpu_custom_call.1} parent=1 // pred_region
      %55 = vst [vmem:[#allocation2] sm:$0xff] 0.0
    $region33: #{tpu_custom_call.1} parent=1 // pred_fallthru
      _
    %v56 = vld [vmem:[#allocation2] sm:$0xff]
    %v57 = vld [vmem:[#allocation3] sm:$0xff]
    %v58 = vld [vmem:[#allocation6] sm:$0xff]
    %v59 = vld [vmem:[#allocation6 + $0x8] sm:$0xff]
    %v60 = vld [vmem:[#allocation6 + $0x10] sm:$0xff]
    %v61 = vld [vmem:[#allocation6 + $0x18] sm:$0xff]
    %v62 = vld [vmem:[#allocation6 + $0x20] sm:$0xff]
    %v63 = vld [vmem:[#allocation6 + $0x28] sm:$0xff]
    %v64 = vld [vmem:[#allocation6 + $0x30] sm:$0xff]
    %v65 = vld [vmem:[#allocation6 + $0x38] sm:$0xff]
    %v66 = vld [vmem:[#allocation6 + $0x40] sm:$0xff]
    %v67 = vld [vmem:[#allocation6 + $0x48] sm:$0xff]
    %v68 = vld [vmem:[#allocation6 + $0x50] sm:$0xff]
    %v69 = vld [vmem:[#allocation6 + $0x58] sm:$0xff]
    %v70 = vld [vmem:[#allocation6 + $0x60] sm:$0xff]
    %v71 = vld [vmem:[#allocation6 + $0x68] sm:$0xff]
    %v72 = vld [vmem:[#allocation6 + $0x70] sm:$0xff]
    %v73 = vld [vmem:[#allocation6 + $0x78] sm:$0xff]
    %74 = vmatpush.msra.mxu0 %v73
    %75 = vmatpush.msra.mxu0 %v72
    %76 = vmatpush.msra.mxu0 %v71
    %77 = vmatpush.msra.mxu0 %v70
    %78 = vmatpush.msra.mxu0 %v69
    %79 = vmatpush.msra.mxu0 %v68
    %80 = vmatpush.msra.mxu0 %v67
    %81 = vmatpush.msra.mxu0 %v66
    %82 = vmatpush.msra.mxu0 %v65
    %83 = vmatpush.msra.mxu0 %v64
    %84 = vmatpush.msra.mxu0 %v63
    %85 = vmatpush.msra.mxu0 %v62
    %86 = vmatpush.msra.mxu0 %v61
    %87 = vmatpush.msra.mxu0 %v60
    %88 = vmatpush.msra.mxu0 %v59
    %89 = vmatpush.msra.mxu0 %v58
    %90 = vmatmul.f32.gmra.mxu0 %v57
    %v91 = vpop.f32.mrf.mxu0
    %v92 = vadd.f32 0.0, %v91
    %93 = vdwg.mxu0
    %v94 = vadd.f32 %v56, %v92
    %95 = vst [vmem:[#allocation2] sm:$0xff] %v94
    // Predicated region
    $region34: #{tpu_custom_call.1} parent=1 // pred_check
      %p96 = pneg %p51
    $region35: #{tpu_custom_call.1} parent=1 // pred_check_branch
      %98 = sbr.rel (%p96) target = $region37
    $region36: #{tpu_custom_call.1} parent=1 // pred_region
      %v99 = vld [vmem:[#allocation2] sm:$0xff]
      %v100 = vld [vmem:[%s2] sm:$0x1]
      %v102 = vperm.slane %v100, 0
      %v104 = vadd.f32 %v99, %v102
      %vm105 = vcmp.gt.f32.partialorder %v104, 0.0
      %v106 = vmul.f32 %v104, 0.01
      %v107 = vsel %vm105, %v104, %v106
      %v108 = vrot.slane %v107, 4
      %v109 = vadd.f32 %v107, %v108
      %v110 = vrot.slane %v109, 2
      %v111 = vadd.f32 %v109, %v110
      %v112 = vrot.slane %v111, 1
      %v113 = vadd.f32 %v111, %v112
      %v114 = vrcp.pop 8.0
      %v115 = vmul.f32 8.0, %v114
      %v116 = vsub.f32 1.0, %v115
      %v117 = vmul.f32 %v114, %v116
      %v118 = vadd.f32 %v114, %v117
      %vm119 = vweird.f32 %v114
      %v120 = vsel %vm119, %v114, %v118
      %v121 = vmul.f32 %v113, %v120
      %v122 = vmul.f32 %v107, %v107
      %v123 = vrot.slane %v122, 4
      %v124 = vadd.f32 %v122, %v123
      %v125 = vrot.slane %v124, 2
      %v126 = vadd.f32 %v124, %v125
      %v127 = vrot.slane %v126, 1
      %v128 = vadd.f32 %v126, %v127
      %v129 = vmul.f32 %v128, %v120
      %v130 = vmul.f32 %v121, %v121
      %v131 = vsub.f32 %v129, %v130
      %v132 = vmax.f32 %v131, 0.0
      %v133 = vadd.f32 %v132, 1e-05
      %v134 = vrsqrt.pop %v133
      %v135 = vmul.f32 %v134, %v133
      %v136 = vmul.f32 %v135, %v134
      %v137 = vmul.f32 0.5, %v136
      %v138 = vsub.f32 1.5, %v137
      %v139 = vmul.f32 %v134, %v138
      %vm140 = vweird.f32 %v133
      %vm141 = vweird.f32 %v134
      %vm142 = vmor %vm140, %vm141
      %v143 = vsel %vm142, %v134, %v139
      %v144 = vld [vmem:[%s3] sm:$0x1]
      %v145 = vmul.f32 %v144, %v143
      %v146 = vld [vmem:[%s4] sm:$0x1]
      %v147 = vmul.f32 %v121, %v145
      %v148 = vsub.f32 %v146, %v147
      %v150 = vperm.slane %v145, 0
      %v152 = vmul.f32 %v107, %v150
      %v154 = vperm.slane %v148, 0
      %v156 = vadd.f32 %v152, %v154
      %157 = vst [vmem:[#allocation8] sm:$0xff] %v156
    $region37: #{tpu_custom_call.1} parent=1 // pred_fallthru
      _
    // Predicated region
    $region38: #{tpu_custom_call.1} parent=1 // pred_check
      _
    $region39: #{tpu_custom_call.1} parent=1 // pred_check_branch
      %159 = sbr.rel (0) target = $region41
    $region40: #{tpu_custom_call.1} parent=1 // pred_region
      %161 = vsyncadd [#allocation5], 0
      %s163 = sshll.u32 [#allocation8], 4
      %s164 = int_to_ptr.vmem [resolvable:$true] %s163
      %s165 = sshll.u32 %s5, 4
      %s166 = int_to_ptr.hbm [resolvable:$true] %s165
      %168 = dma.vmem_to_hbm [thread:$0]  %s164, 128, %s166, [#allocation5]
    $region41: #{tpu_custom_call.1} parent=1 // pred_fallthru
      _
    // Predicated region
    $region42: #{tpu_custom_call.1} parent=1 // pred_check
      _
    $region43: #{tpu_custom_call.1} parent=1 // pred_check_branch
      %170 = sbr.rel (0) target = $region45
    $region44: #{tpu_custom_call.1} parent=1 // pred_region
      %172 = dma.done [#allocation5], 128
    $region45: #{tpu_custom_call.1} parent=1 // pred_fallthru
      _
    %173 = vsyncpa [#allocation4], 1
    %174 = vsyncpa [#allocation7], 1
    %175 = vsyncpa [#allocation5], 1

</llo_original>
